<compile_context>
chip_gen: v7x
topology: tpu7x:2x2x1
jax: 0.10.0
libtpu: 0.0.40
codegen_flags: <defaults>
</compile_context>

<pallas_src>
import functools

import jax
import jax.numpy as jnp
from jax.experimental import pallas as pl
from jax.experimental.pallas import tpu as pltpu


def channel_attention_kernel(x_ref, w1t_ref, b1_ref, w2_ref, b2_ref, o_ref, *, inv_hw):
    """Blocks: x/o (TB, C, HWp); w1t (C, hidden); b1 (1, hidden); w2 (C, hidden); b2 (C, 1)."""
    x = x_ref[...]                                                    # (TB, C, HWp), input dtype

    # Global average pool over the spatial lanes; f32 accumulation, true-HW divisor.
    pooled = jnp.sum(x, axis=-1, keepdims=True, dtype=jnp.float32) * inv_hw   # (TB, C, 1)

    # fc1 + ReLU on VPU/XLU: broadcast-multiply then reduce over channels (sublanes).
    w1t = w1t_ref[...].astype(jnp.float32)                            # (C, hidden)
    h = jnp.sum(pooled * w1t, axis=1, keepdims=True)                  # (TB, 1, hidden)
    h = jnp.maximum(h + b1_ref[...].astype(jnp.float32), 0.0)

    # fc2 + sigmoid: broadcast-multiply then reduce over hidden (lanes).
    w2 = w2_ref[...].astype(jnp.float32)                              # (C, hidden)
    s = jnp.sum(w2 * h, axis=-1, keepdims=True)                       # (TB, C, 1)
    s = s + b2_ref[...].astype(jnp.float32)
    scale = jax.nn.sigmoid(s)                                         # (TB, C, 1)

    # Apply the per-channel scale; no full-tile upcast of x.
    o_ref[...] = x * scale.astype(x.dtype)


def _pick_batch_tile(batch, per_batch_bytes, target_bytes=4 * 1024 * 1024):
    """Largest batch-tile whose block stays under target_bytes, preferring >=2 grid steps."""
    divisors = [d for d in range(1, batch + 1) if batch % d == 0]
    fitting = [d for d in divisors if d * per_batch_bytes <= target_bytes] or [1]
    tb = max(fitting)
    if batch // tb < 2:  # keep two or more grid steps for megacore when the batch allows it
        two_plus = [d for d in fitting if batch // d >= 2]
        if two_plus:
            tb = max(two_plus)
    return tb


def channel_attention(x, w1, b1, w2, b2):
    """x: (B, C, H, W) NCHW; w1: (hidden, C); b1: (hidden,); w2: (C, hidden); b2: (C,)."""
    B, C, H, W = x.shape
    hidden = w1.shape[0]
    HW = H * W
    HWp = ((HW + 127) // 128) * 128          # lane-dense (128-aligned) spatial extent

    x_flat = x.reshape(B, C, HW)
    if HWp != HW:
        x_flat = jnp.pad(x_flat, ((0, 0), (0, 0), (0, HWp - HW)))

    itemsize = x.dtype.itemsize
    tb = _pick_batch_tile(B, C * HWp * itemsize)
    grid = (B // tb,)

    w1t = w1.T                               # (C, hidden): channels on sublanes
    b1r = b1.reshape(1, hidden)
    b2c = b2.reshape(C, 1)

    # in + out blocks, each double-buffered, plus small params / f32 temps + margin.
    block_bytes = tb * C * HWp * itemsize
    vmem_limit = int(min(64 * 1024 * 1024,
                         max(4 * block_bytes + (2 * 1024 * 1024), 16 * 1024 * 1024)))

    cost = pl.CostEstimate(
        flops=int(3 * B * C * HW + 4 * B * C * hidden),
        transcendentals=int(B * C),
        bytes_accessed=int(2 * B * C * HWp * itemsize + (2 * C * hidden + hidden + C) * 4),
    )

    kernel = functools.partial(channel_attention_kernel, inv_hw=float(1.0 / HW))

    out = pl.pallas_call(
        kernel,
        out_shape=jax.ShapeDtypeStruct((B, C, HWp), x.dtype),
        grid_spec=pltpu.PrefetchScalarGridSpec(
            num_scalar_prefetch=0,
            grid=grid,
            in_specs=[
                pl.BlockSpec((tb, C, HWp), lambda g: (g, 0, 0)),
                pl.BlockSpec((C, hidden), lambda g: (0, 0)),
                pl.BlockSpec((1, hidden), lambda g: (0, 0)),
                pl.BlockSpec((C, hidden), lambda g: (0, 0)),
                pl.BlockSpec((C, 1), lambda g: (0, 0)),
            ],
            out_specs=pl.BlockSpec((tb, C, HWp), lambda g: (g, 0, 0)),
        ),
        compiler_params=pltpu.CompilerParams(
            dimension_semantics=("parallel",),
            vmem_limit_bytes=vmem_limit,
        ),
        cost_estimate=cost,
    )(x_flat, w1t, b1r, w2, b2c)

    if HWp != HW:
        out = out[:, :, :HW]
    return out.reshape(B, C, H, W)


def channel_attention_ref(x, w1, b1, w2, b2):
    """Pure-JAX reference matching torch ChannelAttention semantics."""
    y = jnp.mean(x, axis=(2, 3))                 # adaptive avg pool to 1x1 -> (B, C)
    y = jnp.maximum(y @ w1.T + b1, 0.0)          # fc1 + relu
    y = jax.nn.sigmoid(y @ w2.T + b2)            # fc2 + sigmoid
    return x * y[:, :, None, None]


if __name__ == "__main__":
    key = jax.random.PRNGKey(0)
    kx, k1, k2, k3, k4, kx2 = jax.random.split(key, 6)

    # Shapes consistent with ChannelAttention(out_channels=32, reduction_ratio=16).
    B, C, H, W = 4, 32, 16, 16
    hidden = C // 16  # 2

    x = jax.random.normal(kx, (B, C, H, W), dtype=jnp.float32)
    w1 = jax.random.uniform(k1, (hidden, C), jnp.float32, -0.2, 0.2)
    b1 = jax.random.uniform(k2, (hidden,), jnp.float32, -0.2, 0.2)
    w2 = jax.random.uniform(k3, (C, hidden), jnp.float32, -0.5, 0.5)
    b2 = jax.random.uniform(k4, (C,), jnp.float32, -0.5, 0.5)

    out = jax.block_until_ready(channel_attention(x, w1, b1, w2, b2))
    ref = channel_attention_ref(x, w1, b1, w2, b2)
    assert out.shape == (B, C, H, W)
    assert jnp.allclose(out, ref, rtol=1e-5, atol=1e-5)

    # Non-128-aligned spatial size exercises the lane-padding / true-HW-mean path.
    x2 = jax.random.normal(kx2, (2, C, 7, 7), dtype=jnp.float32)
    out2 = jax.block_until_ready(channel_attention(x2, w1, b1, w2, b2))
    ref2 = channel_attention_ref(x2, w1, b1, w2, b2)
    assert jnp.allclose(out2, ref2, rtol=1e-5, atol=1e-5)

    print("KERNEL_OK")
</pallas_src>

<mosaic_0001>
module attributes {stable_mosaic.version = 11 : i64} {
  func.func @channel_attention_kernel(%arg0: i32, %arg1: memref<2x32x256xf32, #tpu.memory_space<vmem>>, %arg2: memref<32x2xf32, #tpu.memory_space<vmem>>, %arg3: memref<1x2xf32, #tpu.memory_space<vmem>>, %arg4: memref<32x2xf32, #tpu.memory_space<vmem>>, %arg5: memref<32x1xf32, #tpu.memory_space<vmem>>, %arg6: memref<2x32x256xf32, #tpu.memory_space<vmem>>) attributes {dimension_semantics = [#tpu.dimension_semantics<parallel>], iteration_bounds = array<i64: 2>, scalar_prefetch = 0 : i64, scratch_operands = 0 : i64, tpu.core_type = #tpu.core_type<tc>, window_params = [{transform_indices = @transform_0, window_bounds = array<i64: 2, 32, 256>}, {pipeline_mode = #tpu.pipeline_mode<synchronous>, transform_indices = @transform_1, window_bounds = array<i64: 32, 2>}, {pipeline_mode = #tpu.pipeline_mode<synchronous>, transform_indices = @transform_2, window_bounds = array<i64: 1, 2>}, {pipeline_mode = #tpu.pipeline_mode<synchronous>, transform_indices = @transform_3, window_bounds = array<i64: 32, 2>}, {pipeline_mode = #tpu.pipeline_mode<synchronous>, transform_indices = @transform_4, window_bounds = array<i64: 32, 1>}, {transform_indices = @transform_5, window_bounds = array<i64: 2, 32, 256>}]} {
    %c0 = arith.constant 0 : index
    %c0_0 = arith.constant 0 : index
    %c0_1 = arith.constant 0 : index
    %0 = vector.load %arg1[%c0, %c0_0, %c0_1] : memref<2x32x256xf32, #tpu.memory_space<vmem>>, vector<2x32x256xf32>
    %cst = arith.constant dense<0.000000e+00> : vector<2x32xf32>
    %1 = vector.multi_reduction <add>, %0, %cst [2] : vector<2x32x256xf32> to vector<2x32xf32>
    %2 = vector.shape_cast %1 : vector<2x32xf32> to vector<2x32x1xf32>
    %cst_2 = arith.constant 3.906250e-03 : f32
    %3 = vector.broadcast %cst_2 : f32 to vector<2x32x1xf32>
    %4 = arith.mulf %2, %3 : vector<2x32x1xf32>
    %c0_3 = arith.constant 0 : index
    %c0_4 = arith.constant 0 : index
    %5 = vector.load %arg2[%c0_3, %c0_4] : memref<32x2xf32, #tpu.memory_space<vmem>>, vector<32x2xf32>
    %6 = vector.shape_cast %5 : vector<32x2xf32> to vector<1x32x2xf32>
    %7 = vector.broadcast %4 : vector<2x32x1xf32> to vector<2x32x2xf32>
    %8 = vector.broadcast %6 : vector<1x32x2xf32> to vector<2x32x2xf32>
    %9 = arith.mulf %7, %8 : vector<2x32x2xf32>
    %cst_5 = arith.constant dense<0.000000e+00> : vector<2x2xf32>
    %10 = vector.multi_reduction <add>, %9, %cst_5 [1] : vector<2x32x2xf32> to vector<2x2xf32>
    %11 = vector.shape_cast %10 : vector<2x2xf32> to vector<2x1x2xf32>
    %c0_6 = arith.constant 0 : index
    %c0_7 = arith.constant 0 : index
    %12 = vector.load %arg3[%c0_6, %c0_7] : memref<1x2xf32, #tpu.memory_space<vmem>>, vector<1x2xf32>
    %13 = vector.shape_cast %12 : vector<1x2xf32> to vector<1x1x2xf32>
    %14 = vector.broadcast %13 : vector<1x1x2xf32> to vector<2x1x2xf32>
    %15 = arith.addf %11, %14 : vector<2x1x2xf32>
    %cst_8 = arith.constant 0.000000e+00 : f32
    %16 = vector.broadcast %cst_8 : f32 to vector<2x1x2xf32>
    %17 = arith.maximumf %15, %16 : vector<2x1x2xf32>
    %c0_9 = arith.constant 0 : index
    %c0_10 = arith.constant 0 : index
    %18 = vector.load %arg4[%c0_9, %c0_10] : memref<32x2xf32, #tpu.memory_space<vmem>>, vector<32x2xf32>
    %19 = vector.shape_cast %18 : vector<32x2xf32> to vector<1x32x2xf32>
    %20 = vector.broadcast %19 : vector<1x32x2xf32> to vector<2x32x2xf32>
    %21 = vector.broadcast %17 : vector<2x1x2xf32> to vector<2x32x2xf32>
    %22 = arith.mulf %20, %21 : vector<2x32x2xf32>
    %cst_11 = arith.constant dense<0.000000e+00> : vector<2x32xf32>
    %23 = vector.multi_reduction <add>, %22, %cst_11 [2] : vector<2x32x2xf32> to vector<2x32xf32>
    %24 = vector.shape_cast %23 : vector<2x32xf32> to vector<2x32x1xf32>
    %c0_12 = arith.constant 0 : index
    %c0_13 = arith.constant 0 : index
    %25 = vector.load %arg5[%c0_12, %c0_13] : memref<32x1xf32, #tpu.memory_space<vmem>>, vector<32x1xf32>
    %26 = vector.shape_cast %25 : vector<32x1xf32> to vector<1x32x1xf32>
    %27 = vector.broadcast %26 : vector<1x32x1xf32> to vector<2x32x1xf32>
    %28 = arith.addf %24, %27 : vector<2x32x1xf32>
    %29 = arith.negf %28 : vector<2x32x1xf32>
    %30 = math.exp %29 : vector<2x32x1xf32>
    %cst_14 = arith.constant 1.000000e+00 : f32
    %31 = vector.broadcast %cst_14 : f32 to vector<2x32x1xf32>
    %32 = arith.addf %31, %30 : vector<2x32x1xf32>
    %33 = arith.divf %31, %32 : vector<2x32x1xf32>
    %34 = vector.broadcast %33 : vector<2x32x1xf32> to vector<2x32x256xf32>
    %35 = arith.mulf %0, %34 : vector<2x32x256xf32>
    %c0_15 = arith.constant 0 : index
    %c0_16 = arith.constant 0 : index
    %c0_17 = arith.constant 0 : index
    %36 = vector.load %arg6[%c0_15, %c0_16, %c0_17] : memref<2x32x256xf32, #tpu.memory_space<vmem>>, vector<2x32x256xf32>
    tpu.vector_store %arg6[%c0_15, %c0_16, %c0_17], %35 {strides = array<i32>} : memref<2x32x256xf32, #tpu.memory_space<vmem>>, vector<2x32x256xf32>,
    return
  }
  func.func @transform_0(%arg0: i32) -> (i32, i32, i32) {
    %c0_i32 = arith.constant 0 : i32
    %c0_i32_0 = arith.constant 0 : i32
    %c0_i32_1 = arith.constant 0 : i32
    return %arg0, %c0_i32, %c0_i32_0 : i32, i32, i32
  }
  func.func @transform_1(%arg0: i32) -> (i32, i32) {
    %c0_i32 = arith.constant 0 : i32
    %c0_i32_0 = arith.constant 0 : i32
    %c0_i32_1 = arith.constant 0 : i32
    return %c0_i32, %c0_i32_0 : i32, i32
  }
  func.func @transform_2(%arg0: i32) -> (i32, i32) {
    %c0_i32 = arith.constant 0 : i32
    %c0_i32_0 = arith.constant 0 : i32
    %c0_i32_1 = arith.constant 0 : i32
    return %c0_i32, %c0_i32_0 : i32, i32
  }
  func.func @transform_3(%arg0: i32) -> (i32, i32) {
    %c0_i32 = arith.constant 0 : i32
    %c0_i32_0 = arith.constant 0 : i32
    %c0_i32_1 = arith.constant 0 : i32
    return %c0_i32, %c0_i32_0 : i32, i32
  }
  func.func @transform_4(%arg0: i32) -> (i32, i32) {
    %c0_i32 = arith.constant 0 : i32
    %c0_i32_0 = arith.constant 0 : i32
    %c0_i32_1 = arith.constant 0 : i32
    return %c0_i32, %c0_i32_0 : i32, i32
  }
  func.func @transform_5(%arg0: i32) -> (i32, i32, i32) {
    %c0_i32 = arith.constant 0 : i32
    %c0_i32_0 = arith.constant 0 : i32
    %c0_i32_1 = arith.constant 0 : i32
    return %arg0, %c0_i32, %c0_i32_0 : i32, i32, i32
  }
}

</mosaic_0001>

<llo_original>
// kernel: tpu_custom_call.1
$region0: #{tpu_custom_call.1}
  #allocation0 [shape = 'u32[]', space=smem, size = 0x4, offset = 0x4, fixed_abs, tag = 'smem constant byte address 0x4 - core index']
  #allocation1 [shape = 'u32[144,128]{1,0:T(1,128)}', space=vmem, size = 0x12000, scoped, tag = 'internal scratch']
  %s0 = inlined_call_operand.hbm [shape: f32[4,32,256], index: 0, kind: input, shape index: {}]
  %s1 = inlined_call_operand.vmem [shape: f32[32,2], index: 1, kind: input, shape index: {}]
  %s2 = inlined_call_operand.vmem [shape: f32[1,2], index: 2, kind: input, shape index: {}]
  %s3 = inlined_call_operand.vmem [shape: f32[32,2], index: 3, kind: input, shape index: {}]
  %s4 = inlined_call_operand.vmem [shape: f32[32,1], index: 4, kind: input, shape index: {}]
  %s5 = inlined_call_operand.hbm [shape: f32[4,32,256], index: 5, kind: output, shape index: {}]
  %s6 = sld [smem:[#allocation0]]
  $region57: #{tpu_custom_call.1} parent=0
    _
  %s8 = ssub.s32 1, %s6
  %s9 = scalar_select 0, %s8, %s6
  $region1: #{tpu_custom_call.1} parent=0
    #allocation2 [shape = 'u8[131072]{0}', space=vmem, size = 0x20000, scoped, tag = 'input window, operand 0']
    #allocation3 [shape = 's32[2]{0}', space=sflag, size = 0x8, scoped, tag = 'scoped memory for tpu_custom_call.1']
    #allocation4 [shape = 's32[2]{0}', space=sflag, size = 0x8, scoped, tag = 'scoped memory for tpu_custom_call.1']
    #allocation5 [shape = 'u8[131072]{0}', space=vmem, size = 0x20000, scoped, tag = 'output window, operand 0']
    %10 = vsyncpa [#allocation3], 0
    %s11 = scalar_lea.sflag [#allocation3], 1
    %12 = vsyncpa %s11, 0
    %13 = vsyncpa [#allocation4], 0
    %s14 = scalar_lea.sflag [#allocation4], 1
    %15 = vsyncpa %s14, 0
    loop: start=0, step=1, limit=4
    $region2: #{tpu_custom_call.1} parent=1 // loop_pre_header
      _
    $region3: #{tpu_custom_call.1} parent=1 // loop_header
      %s17 = sphi 0, %s21
      %p18 = scmp.ge.s32.totalorder %s17, 4
      %s27 = sphi 0, %s29
      %s30 = sphi 0, %s27
      %s31 = sphi 0, %s30
      %s47 = sphi 0, %s31
      %s51 = sphi 0, %s51
      %s53 = sphi 0, %s51
      %s54 = sphi 0, %s53
      %s68 = sphi 0, %s54
      %s72 = sphi 0, %s72
      %s74 = sphi 0, %s72
      %s75 = sphi 0, %s74
      %s89 = sphi 0, %s75
      %s93 = sphi 0, %s93
      %s95 = sphi 0, %s93
      %s96 = sphi 0, %s95
      %s110 = sphi 0, %s96
      %s114 = sphi 0, %s114
      %s116 = sphi 0, %s114
      %s117 = sphi 0, %s116
      %s131 = sphi 0, %s117
      %s137 = sphi 0, %s139
      %s140 = sphi 0, %s137
      %s141 = sphi 0, %s140
      %s157 = sphi 0, %s141
    $region4: #{tpu_custom_call.1} parent=1 // loop_header_branch
      %20 = sbr.rel (%p18) target = $region8
    $region5: #{tpu_custom_call.1} parent=1 // loop_body
      %s22 = ssub.s32 %s17, 1
      %s23 = ssub.s32 %s17, 2
      %s24 = sadd.s32 %s17, 1
      %s25 = ssub.s32 %s17, %s24
      %p26 = scmp.eq.s32.totalorder %s25, 0
      %s28 = sadd.s32 %s27, 1
      %s29 = scalar_select %p26, %s27, %s28
      %p32 = pneg %p26
      %p33 = scmp.eq.s32.totalorder %s17, 1
      %p34 = por %p32, %p33
      %p35 = scmp.ne.s32.totalorder %s27, %s30
      %p36 = scmp.eq.s32.totalorder %s17, 0
      %p37 = por %p35, %p36
      %p38 = scmp.ne.s32.totalorder %s27, %s30
      %p39 = scmp.eq.s32.totalorder %s22, 1
      %p40 = por %p38, %p39
      %p41 = scmp.ne.s32.totalorder %s30, %s31
      %p42 = scmp.eq.s32.totalorder %s22, 0
      %p43 = por %p41, %p42
      %p44 = scmp.ne.s32.totalorder %s30, %s31
      %p45 = scmp.eq.s32.totalorder %s23, 1
      %p46 = por %p44, %p45
      %p48 = scmp.ne.s32.totalorder %s31, %s47
      %p49 = scmp.eq.s32.totalorder %s23, 0
      %p50 = por %p48, %p49
      %s52 = sadd.s32 %s51, 1
      %p55 = scmp.eq.s32.totalorder %s17, 1
      %p56 = scmp.ne.s32.totalorder %s51, %s53
      %p57 = scmp.eq.s32.totalorder %s17, 0
      %p58 = por %p56, %p57
      %p59 = scmp.ne.s32.totalorder %s51, %s53
      %p60 = scmp.eq.s32.totalorder %s22, 1
      %p61 = por %p59, %p60
      %p62 = scmp.ne.s32.totalorder %s53, %s54
      %p63 = scmp.eq.s32.totalorder %s22, 0
      %p64 = por %p62, %p63
      %p65 = scmp.ne.s32.totalorder %s53, %s54
      %p66 = scmp.eq.s32.totalorder %s23, 1
      %p67 = por %p65, %p66
      %p69 = scmp.ne.s32.totalorder %s54, %s68
      %p70 = scmp.eq.s32.totalorder %s23, 0
      %p71 = por %p69, %p70
      %s73 = sadd.s32 %s72, 1
      %p76 = scmp.eq.s32.totalorder %s17, 1
      %p77 = scmp.ne.s32.totalorder %s72, %s74
      %p78 = scmp.eq.s32.totalorder %s17, 0
      %p79 = por %p77, %p78
      %p80 = scmp.ne.s32.totalorder %s72, %s74
      %p81 = scmp.eq.s32.totalorder %s22, 1
      %p82 = por %p80, %p81
      %p83 = scmp.ne.s32.totalorder %s74, %s75
      %p84 = scmp.eq.s32.totalorder %s22, 0
      %p85 = por %p83, %p84
      %p86 = scmp.ne.s32.totalorder %s74, %s75
      %p87 = scmp.eq.s32.totalorder %s23, 1
      %p88 = por %p86, %p87
      %p90 = scmp.ne.s32.totalorder %s75, %s89
      %p91 = scmp.eq.s32.totalorder %s23, 0
      %p92 = por %p90, %p91
      %s94 = sadd.s32 %s93, 1
      %p97 = scmp.eq.s32.totalorder %s17, 1
      %p98 = scmp.ne.s32.totalorder %s93, %s95
      %p99 = scmp.eq.s32.totalorder %s17, 0
      %p100 = por %p98, %p99
      %p101 = scmp.ne.s32.totalorder %s93, %s95
      %p102 = scmp.eq.s32.totalorder %s22, 1
      %p103 = por %p101, %p102
      %p104 = scmp.ne.s32.totalorder %s95, %s96
      %p105 = scmp.eq.s32.totalorder %s22, 0
      %p106 = por %p104, %p105
      %p107 = scmp.ne.s32.totalorder %s95, %s96
      %p108 = scmp.eq.s32.totalorder %s23, 1
      %p109 = por %p107, %p108
      %p111 = scmp.ne.s32.totalorder %s96, %s110
      %p112 = scmp.eq.s32.totalorder %s23, 0
      %p113 = por %p111, %p112
      %s115 = sadd.s32 %s114, 1
      %p118 = scmp.eq.s32.totalorder %s17, 1
      %p119 = scmp.ne.s32.totalorder %s114, %s116
      %p120 = scmp.eq.s32.totalorder %s17, 0
      %p121 = por %p119, %p120
      %p122 = scmp.ne.s32.totalorder %s114, %s116
      %p123 = scmp.eq.s32.totalorder %s22, 1
      %p124 = por %p122, %p123
      %p125 = scmp.ne.s32.totalorder %s116, %s117
      %p126 = scmp.eq.s32.totalorder %s22, 0
      %p127 = por %p125, %p126
      %p128 = scmp.ne.s32.totalorder %s116, %s117
      %p129 = scmp.eq.s32.totalorder %s23, 1
      %p130 = por %p128, %p129
      %p132 = scmp.ne.s32.totalorder %s117, %s131
      %p133 = scmp.eq.s32.totalorder %s23, 0
      %p134 = por %p132, %p133
      %s135 = ssub.s32 %s17, %s24
      %p136 = scmp.eq.s32.totalorder %s135, 0
      %s138 = sadd.s32 %s137, 1
      %s139 = scalar_select %p136, %s137, %s138
      %p142 = pneg %p136
      %p143 = scmp.eq.s32.totalorder %s17, 1
      %p144 = por %p142, %p143
      %p145 = scmp.ne.s32.totalorder %s137, %s140
      %p146 = scmp.eq.s32.totalorder %s17, 0
      %p147 = por %p145, %p146
      %p148 = scmp.ne.s32.totalorder %s137, %s140
      %p149 = scmp.eq.s32.totalorder %s22, 1
      %p150 = por %p148, %p149
      %p151 = scmp.ne.s32.totalorder %s140, %s141
      %p152 = scmp.eq.s32.totalorder %s22, 0
      %p153 = por %p151, %p152
      %p154 = scmp.ne.s32.totalorder %s140, %s141
      %p155 = scmp.eq.s32.totalorder %s23, 1
      %p156 = por %p154, %p155
      %p158 = scmp.ne.s32.totalorder %s141, %s157
      %p159 = scmp.eq.s32.totalorder %s23, 0
      %p160 = por %p158, %p159
      %p161 = scmp.le.s32.totalorder 1, %s17
      %p162 = scmp.lt.s32.totalorder %s17, 3
      %p163 = pnand %p161, %p162
      %p164 = pneg %p163
      // Predicated region
      $region9: #{tpu_custom_call.1} parent=5 // pred_check
        _
      $region10: #{tpu_custom_call.1} parent=5 // pred_check_branch
        %166 = sbr.rel (%p163) target = $region12
      $region11: #{tpu_custom_call.1} parent=5 // pred_region
        %s167 = ssub.s32 %s17, 1
        // Predicated region
        $region13: #{tpu_custom_call.1} parent=11 // pred_check
          %p168 = pneg %p64
        $region14: #{tpu_custom_call.1} parent=11 // pred_check_branch
          %170 = sbr.rel (%p168) target = $region16
        $region15: #{tpu_custom_call.1} parent=11 // pred_region
          _
        $region16: #{tpu_custom_call.1} parent=11 // pred_fallthru
          _
        // Predicated region
        $region17: #{tpu_custom_call.1} parent=11 // pred_check
          %p171 = pneg %p85
        $region18: #{tpu_custom_call.1} parent=11 // pred_check_branch
          %173 = sbr.rel (%p171) target = $region20
        $region19: #{tpu_custom_call.1} parent=11 // pred_region
          _
        $region20: #{tpu_custom_call.1} parent=11 // pred_fallthru
          _
        // Predicated region
        $region21: #{tpu_custom_call.1} parent=11 // pred_check
          %p174 = pneg %p106
        $region22: #{tpu_custom_call.1} parent=11 // pred_check_branch
          %176 = sbr.rel (%p174) target = $region24
        $region23: #{tpu_custom_call.1} parent=11 // pred_region
          _
        $region24: #{tpu_custom_call.1} parent=11 // pred_fallthru
          _
        // Predicated region
        $region25: #{tpu_custom_call.1} parent=11 // pred_check
          %p177 = pneg %p127
        $region26: #{tpu_custom_call.1} parent=11 // pred_check_branch
          %179 = sbr.rel (%p177) target = $region28
        $region27: #{tpu_custom_call.1} parent=11 // pred_region
          _
        $region28: #{tpu_custom_call.1} parent=11 // pred_fallthru
          _
      $region12: #{tpu_custom_call.1} parent=5 // pred_fallthru
        _
      %p180 = scmp.lt.s32.totalorder %s17, 2
      // Predicated region
      $region29: #{tpu_custom_call.1} parent=5 // pred_check
        %p181 = pneg %p180
      $region30: #{tpu_custom_call.1} parent=5 // pred_check_branch
        %183 = sbr.rel (%p181) target = $region32
      $region31: #{tpu_custom_call.1} parent=5 // pred_region
        // Predicated region
        $region33: #{tpu_custom_call.1} parent=31 // pred_check
          %p184 = pneg %p37
        $region34: #{tpu_custom_call.1} parent=31 // pred_check_branch
          %186 = sbr.rel (%p184) target = $region36
        $region35: #{tpu_custom_call.1} parent=31 // pred_region
          %s187 = sand.u32 %s27, 1
          %s188 = scalar_lea.sflag [#allocation3], %s187
          %s189 = sand.u32 %s27, 1
          %s190 = smul.addr %s189, 128
          %s191 = scalar_lea.vmem [#allocation2], %s190
          %s192 = smul.u32 2, %s17
          %s194 = ssub.s32 2048, 2048
          %195 = vsyncadd %s188, %s194
          %s196 = smul.addr %s192, 8
          %s197 = smul.addr %s196, 128
          %s198 = scalar_lea.hbm %s0, %s197
          %s199 = sshll.u32 %s191, 4
          %s200 = int_to_ptr.vmem [resolvable:$true] %s199
          %205 = dma.hbm_to_vmem [thread:$0]  %s198, 2048, %s200, %s188, 256, 256, 16
        $region36: #{tpu_custom_call.1} parent=31 // pred_fallthru
          _
      $region32: #{tpu_custom_call.1} parent=5 // pred_fallthru
        _
      %p206 = scmp.le.s32.totalorder 1, %s17
      %p207 = scmp.lt.s32.totalorder %s17, 3
      %p208 = pnand %p206, %p207
      %p209 = pneg %p208
      // Predicated region
      $region37: #{tpu_custom_call.1} parent=5 // pred_check
        _
      $region38: #{tpu_custom_call.1} parent=5 // pred_check_branch
        %211 = sbr.rel (%p208) target = $region40
      $region39: #{tpu_custom_call.1} parent=5 // pred_region
        %s212 = ssub.s32 %s17, 1
        %s213 = sand.u32 %s30, 1
        %s214 = scalar_lea.sflag [#allocation3], %s213
        %s215 = sand.u32 %s30, 1
        %s216 = smul.addr %s215, 128
        %s217 = scalar_lea.vmem [#allocation2], %s216
        // Predicated region
        $region41: #{tpu_custom_call.1} parent=39 // pred_check
          %p218 = pneg %p43
        $region42: #{tpu_custom_call.1} parent=39 // pred_check_branch
          %220 = sbr.rel (%p218) target = $region44
        $region43: #{tpu_custom_call.1} parent=39 // pred_region
          %221 = dma.done %s214, 2048
        $region44: #{tpu_custom_call.1} parent=39 // pred_fallthru
          _
        %s222 = sand.u32 %s30, 1
        %s223 = scalar_lea.sflag [#allocation3], %s222
        %s224 = sand.u32 %s30, 1
        %s225 = smul.addr %s224, 128
        %s226 = scalar_lea.vmem [#allocation2], %s225
        %p227 = pneg %p43
        %p228 = pneg %p40
        %p229 = pneg %p64
        %p230 = pneg %p61
        %p231 = pneg %p85
        %p232 = pneg %p82
        %p233 = pneg %p106
        %p234 = pneg %p103
        %p235 = pneg %p127
        %p236 = pneg %p124
        %p237 = pneg %p153
        %p238 = pneg %p150
        %s239 = sand.u32 %s140, 1
        %s240 = scalar_lea.sflag [#allocation4], %s239
        %s241 = sand.u32 %s140, 1
        %s242 = smul.addr %s241, 128
        %s243 = scalar_lea.vmem [#allocation5], %s242
        %s244 = smul.u32 2, %s22
        %s245 = smul.u32 2, %s22
        %v246 = vld [vmem:[%s217] sm:$0xff]
        %v247 = vld [vmem:[%s217 + $0x8] sm:$0xff]
        %v248 = vld [vmem:[%s217 + $0x10] sm:$0xff]
        %v249 = vld [vmem:[%s217 + $0x18] sm:$0xff]
        %v250 = vld [vmem:[%s217 + $0x20] sm:$0xff]
        %v251 = vld [vmem:[%s217 + $0x28] sm:$0xff]
        %v252 = vld [vmem:[%s217 + $0x30] sm:$0xff]
        %v253 = vld [vmem:[%s217 + $0x38] sm:$0xff]
        %v254 = vld [vmem:[%s217 + $0x40] sm:$0xff]
        %v255 = vld [vmem:[%s217 + $0x48] sm:$0xff]
        %v256 = vld [vmem:[%s217 + $0x50] sm:$0xff]
        %v257 = vld [vmem:[%s217 + $0x58] sm:$0xff]
        %v258 = vld [vmem:[%s217 + $0x60] sm:$0xff]
        %v259 = vld [vmem:[%s217 + $0x68] sm:$0xff]
        %v260 = vld [vmem:[%s217 + $0x70] sm:$0xff]
        %v261 = vld [vmem:[%s217 + $0x78] sm:$0xff]
        %v262 = vadd.f32 %v246, %v247
        %263 = vadd.xlane.f32.xlu0 %v262
        %v264 = vpop.xlane.xlu0 %263
        %v265 = vadd.f32 %v248, %v249
        %266 = vadd.xlane.f32.xlu0 %v265
        %v267 = vpop.xlane.xlu0 %266
        %v268 = vadd.f32 %v250, %v251
        %269 = vadd.xlane.f32.xlu0 %v268
        %v270 = vpop.xlane.xlu0 %269
        %v271 = vadd.f32 %v252, %v253
        %272 = vadd.xlane.f32.xlu0 %v271
        %v273 = vpop.xlane.xlu0 %272
        %v274 = vadd.f32 %v254, %v255
        %275 = vadd.xlane.f32.xlu0 %v274
        %v276 = vpop.xlane.xlu0 %275
        %v277 = vadd.f32 %v256, %v257
        %278 = vadd.xlane.f32.xlu0 %v277
        %v279 = vpop.xlane.xlu0 %278
        %v280 = vadd.f32 %v258, %v259
        %281 = vadd.xlane.f32.xlu0 %v280
        %v282 = vpop.xlane.xlu0 %281
        %v283 = vadd.f32 %v260, %v261
        %284 = vadd.xlane.f32.xlu0 %v283
        %v285 = vpop.xlane.xlu0 %284
        %v286 = vmul.f32 %v264, 0.00390625
        %v287 = vmul.f32 %v267, 0.00390625
        %v288 = vmul.f32 %v270, 0.00390625
        %v289 = vmul.f32 %v273, 0.00390625
        %v290 = vmul.f32 %v276, 0.00390625
        %v291 = vmul.f32 %v279, 0.00390625
        %v292 = vmul.f32 %v282, 0.00390625
        %v293 = vmul.f32 %v285, 0.00390625
        %v294 = vld [vmem:[%s1] sm:$0xff]
        %v295 = vld [vmem:[%s1 + $0x8] sm:$0xff]
        %v296 = vld [vmem:[%s1 + $0x10] sm:$0xff]
        %v297 = vld [vmem:[%s1 + $0x18] sm:$0xff]
        %v298 = vmul.f32 %v286, %v294
        %v299 = vmul.f32 %v287, %v295
        %v300 = vmul.f32 %v288, %v296
        %v301 = vmul.f32 %v289, %v297
        %v302 = vmul.f32 %v290, %v294
        %v303 = vmul.f32 %v291, %v295
        %v304 = vmul.f32 %v292, %v296
        %v305 = vmul.f32 %v293, %v297
        %vm306 = vcmask 15360
        %v307 = vsel %vm306, %v298, 0.0
        %v308 = vsel %vm306, %v299, 0.0
        %v309 = vadd.f32 %v307, %v308
        %v310 = vsel %vm306, %v300, 0.0
        %v311 = vadd.f32 %v309, %v310
        %v312 = vsel %vm306, %v301, 0.0
        %v313 = vadd.f32 %v311, %v312
        %v314 = vrot.slane %v313, 4
        %v315 = vadd.f32 %v313, %v314
        %v316 = vrot.slane %v315, 2
        %v317 = vadd.f32 %v315, %v316
        %v318 = vrot.slane %v317, 1
        %v319 = vadd.f32 %v317, %v318
        %v320 = vsel %vm306, %v302, 0.0
        %v321 = vsel %vm306, %v303, 0.0
        %v322 = vadd.f32 %v320, %v321
        %v323 = vsel %vm306, %v304, 0.0
        %v324 = vadd.f32 %v322, %v323
        %v325 = vsel %vm306, %v305, 0.0
        %v326 = vadd.f32 %v324, %v325
        %v327 = vrot.slane %v326, 4
        %v328 = vadd.f32 %v326, %v327
        %v329 = vrot.slane %v328, 2
        %v330 = vadd.f32 %v328, %v329
        %v331 = vrot.slane %v330, 1
        %v332 = vadd.f32 %v330, %v331
        %v333 = vld [vmem:[%s2] sm:$0x1]
        %v334 = vadd.f32 %v319, %v333
        %v335 = vadd.f32 %v332, %v333
        %v336 = vmax.f32 %v334, 0.0
        %v337 = vmax.f32 %v335, 0.0
        %v338 = vld [vmem:[%s3] sm:$0xff]
        %v339 = vld [vmem:[%s3 + $0x8] sm:$0xff]
        %v340 = vld [vmem:[%s3 + $0x10] sm:$0xff]
        %v341 = vld [vmem:[%s3 + $0x18] sm:$0xff]
        %v342 = vlaneseq
        %v343 = vshrl.u32 %v342, 7
        %v344 = vsub.s32 0, %v343
        %v345 = vrot.slane %v336, %v344
        %v346 = vlaneseq
        %v347 = vshrl.u32 %v346, 7
        %v348 = vsub.s32 0, %v347
        %v349 = vrot.slane %v337, %v348
        %v350 = vmul.f32 %v338, %v345
        %v351 = vmul.f32 %v339, %v345
        %v352 = vmul.f32 %v340, %v345
        %v353 = vmul.f32 %v341, %v345
        %v354 = vmul.f32 %v338, %v349
        %v355 = vmul.f32 %v339, %v349
        %v356 = vmul.f32 %v340, %v349
        %v357 = vmul.f32 %v341, %v349
        %v358 = vsel %vm306, %v350, 0.0
        %359 = vadd.xlane.f32.xlu0 %v358
        %v360 = vpop.xlane.xlu0 %359
        %v361 = vsel %vm306, %v351, 0.0
        %362 = vadd.xlane.f32.xlu0 %v361
        %v363 = vpop.xlane.xlu0 %362
        %v364 = vsel %vm306, %v352, 0.0
        %365 = vadd.xlane.f32.xlu0 %v364
        %v366 = vpop.xlane.xlu0 %365
        %v367 = vsel %vm306, %v353, 0.0
        %368 = vadd.xlane.f32.xlu0 %v367
        %v369 = vpop.xlane.xlu0 %368
        %v370 = vsel %vm306, %v354, 0.0
        %371 = vadd.xlane.f32.xlu0 %v370
        %v372 = vpop.xlane.xlu0 %371
        %v373 = vsel %vm306, %v355, 0.0
        %374 = vadd.xlane.f32.xlu0 %v373
        %v375 = vpop.xlane.xlu0 %374
        %v376 = vsel %vm306, %v356, 0.0
        %377 = vadd.xlane.f32.xlu0 %v376
        %v378 = vpop.xlane.xlu0 %377
        %v379 = vsel %vm306, %v357, 0.0
        %380 = vadd.xlane.f32.xlu0 %v379
        %v381 = vpop.xlane.xlu0 %380
        %v382 = vld [vmem:[%s4] sm:$0xff]
        %v383 = vld [vmem:[%s4 + $0x8] sm:$0xff]
        %v384 = vld [vmem:[%s4 + $0x10] sm:$0xff]
        %v385 = vld [vmem:[%s4 + $0x18] sm:$0xff]
        %v386 = vadd.f32 %v360, %v382
        %v387 = vadd.f32 %v363, %v383
        %v388 = vadd.f32 %v366, %v384
        %v389 = vadd.f32 %v369, %v385
        %v390 = vadd.f32 %v372, %v382
        %v391 = vadd.f32 %v375, %v383
        %v392 = vadd.f32 %v378, %v384
        %v393 = vadd.f32 %v381, %v385
        %v394 = vxor.u32 %v386, 2147483648
        %v395 = vxor.u32 %v387, 2147483648
        %v396 = vxor.u32 %v388, 2147483648
        %v397 = vxor.u32 %v389, 2147483648
        %v398 = vxor.u32 %v390, 2147483648
        %v399 = vxor.u32 %v391, 2147483648
        %v400 = vxor.u32 %v392, 2147483648
        %v401 = vxor.u32 %v393, 2147483648
        %v402 = vmul.f32 %v394, 1.442695
        %v403 = vpow.pop %v402
        %v404 = vmul.f32 %v395, 1.442695
        %v405 = vpow.pop %v404
        %v406 = vmul.f32 %v396, 1.442695
        %v407 = vpow.pop %v406
        %v408 = vmul.f32 %v397, 1.442695
        %v409 = vpow.pop %v408
        %v410 = vmul.f32 %v398, 1.442695
        %v411 = vpow.pop %v410
        %v412 = vmul.f32 %v399, 1.442695
        %v413 = vpow.pop %v412
        %v414 = vmul.f32 %v400, 1.442695
        %v415 = vpow.pop %v414
        %v416 = vmul.f32 %v401, 1.442695
        %v417 = vpow.pop %v416
        %v418 = vadd.f32 %v403, 1.0
        %v419 = vadd.f32 %v405, 1.0
        %v420 = vadd.f32 %v407, 1.0
        %v421 = vadd.f32 %v409, 1.0
        %v422 = vadd.f32 %v411, 1.0
        %v423 = vadd.f32 %v413, 1.0
        %v424 = vadd.f32 %v415, 1.0
        %v425 = vadd.f32 %v417, 1.0
        %v426 = vrcp.pop %v418
        %v427 = vmul.f32 1.0, %v426
        %v428 = vrcp.pop %v419
        %v429 = vmul.f32 1.0, %v428
        %v430 = vrcp.pop %v420
        %v431 = vmul.f32 1.0, %v430
        %v432 = vrcp.pop %v421
        %v433 = vmul.f32 1.0, %v432
        %v434 = vrcp.pop %v422
        %v435 = vmul.f32 1.0, %v434
        %v436 = vrcp.pop %v423
        %v437 = vmul.f32 1.0, %v436
        %v438 = vrcp.pop %v424
        %v439 = vmul.f32 1.0, %v438
        %v440 = vrcp.pop %v425
        %v441 = vmul.f32 1.0, %v440
        %443 = vset.pattern.permute.xlu0 0
        %444 = vperm.xlu0 %443, %v427
        %v445 = vpop.permute.xlu0 %444
        %448 = vset.pattern.permute.xlu0 0
        %449 = vperm.xlu0 %448, %v429
        %v450 = vpop.permute.xlu0 %449
        %453 = vset.pattern.permute.xlu0 0
        %454 = vperm.xlu0 %453, %v431
        %v455 = vpop.permute.xlu0 %454
        %458 = vset.pattern.permute.xlu0 0
        %459 = vperm.xlu0 %458, %v433
        %v460 = vpop.permute.xlu0 %459
        %463 = vset.pattern.permute.xlu0 0
        %464 = vperm.xlu0 %463, %v435
        %v465 = vpop.permute.xlu0 %464
        %468 = vset.pattern.permute.xlu0 0
        %469 = vperm.xlu0 %468, %v437
        %v470 = vpop.permute.xlu0 %469
        %473 = vset.pattern.permute.xlu0 0
        %474 = vperm.xlu0 %473, %v439
        %v475 = vpop.permute.xlu0 %474
        %478 = vset.pattern.permute.xlu0 0
        %479 = vperm.xlu0 %478, %v441
        %v480 = vpop.permute.xlu0 %479
        %v482 = vmul.f32 %v246, %v445
        %v483 = vmul.f32 %v247, %v445
        %v484 = vmul.f32 %v248, %v450
        %v485 = vmul.f32 %v249, %v450
        %v486 = vmul.f32 %v250, %v455
        %v487 = vmul.f32 %v251, %v455
        %v488 = vmul.f32 %v252, %v460
        %v489 = vmul.f32 %v253, %v460
        %v490 = vmul.f32 %v254, %v465
        %v491 = vmul.f32 %v255, %v465
        %v492 = vmul.f32 %v256, %v470
        %v493 = vmul.f32 %v257, %v470
        %v494 = vmul.f32 %v258, %v475
        %v495 = vmul.f32 %v259, %v475
        %v496 = vmul.f32 %v260, %v480
        %v497 = vmul.f32 %v261, %v480
        %498 = vst [vmem:[%s243] sm:$0xff] %v482
        %499 = vst [vmem:[%s243 + $0x8] sm:$0xff] %v483
        %500 = vst [vmem:[%s243 + $0x10] sm:$0xff] %v484
        %501 = vst [vmem:[%s243 + $0x18] sm:$0xff] %v485
        %502 = vst [vmem:[%s243 + $0x20] sm:$0xff] %v486
        %503 = vst [vmem:[%s243 + $0x28] sm:$0xff] %v487
        %504 = vst [vmem:[%s243 + $0x30] sm:$0xff] %v488
        %505 = vst [vmem:[%s243 + $0x38] sm:$0xff] %v489
        %506 = vst [vmem:[%s243 + $0x40] sm:$0xff] %v490
        %507 = vst [vmem:[%s243 + $0x48] sm:$0xff] %v491
        %508 = vst [vmem:[%s243 + $0x50] sm:$0xff] %v492
        %509 = vst [vmem:[%s243 + $0x58] sm:$0xff] %v493
        %510 = vst [vmem:[%s243 + $0x60] sm:$0xff] %v494
        %511 = vst [vmem:[%s243 + $0x68] sm:$0xff] %v495
        %512 = vst [vmem:[%s243 + $0x70] sm:$0xff] %v496
        %513 = vst [vmem:[%s243 + $0x78] sm:$0xff] %v497
        %s514 = sand.u32 %s140, 1
        %s515 = scalar_lea.sflag [#allocation4], %s514
        %s516 = sand.u32 %s140, 1
        %s517 = smul.addr %s516, 128
        %s518 = scalar_lea.vmem [#allocation5], %s517
        // Predicated region
        $region45: #{tpu_custom_call.1} parent=39 // pred_check
          %p519 = pneg %p150
        $region46: #{tpu_custom_call.1} parent=39 // pred_check_branch
          %521 = sbr.rel (%p519) target = $region48
        $region47: #{tpu_custom_call.1} parent=39 // pred_region
          %s522 = smul.u32 2, %s22
          %s524 = ssub.s32 2048, 2048
          %525 = vsyncadd %s515, %s524
          %s526 = smul.addr %s522, 8
          %s527 = smul.addr %s526, 128
          %s528 = scalar_lea.hbm %s5, %s527
          %s529 = sshll.u32 %s518, 4
          %s530 = int_to_ptr.vmem [resolvable:$true] %s529
          %535 = dma.vmem_to_hbm [thread:$0]  %s530, 2048, %s528, %s515, 256, 256, 16
        $region48: #{tpu_custom_call.1} parent=39 // pred_fallthru
          _
      $region40: #{tpu_custom_call.1} parent=5 // pred_fallthru
        _
      %p536 = scmp.le.s32.totalorder 2, %s17
      // Predicated region
      $region49: #{tpu_custom_call.1} parent=5 // pred_check
        %p537 = pneg %p536
      $region50: #{tpu_custom_call.1} parent=5 // pred_check_branch
        %539 = sbr.rel (%p537) target = $region52
      $region51: #{tpu_custom_call.1} parent=5 // pred_region
        %s540 = ssub.s32 %s17, 2
        // Predicated region
        $region53: #{tpu_custom_call.1} parent=51 // pred_check
          %p541 = pneg %p156
        $region54: #{tpu_custom_call.1} parent=51 // pred_check_branch
          %543 = sbr.rel (%p541) target = $region56
        $region55: #{tpu_custom_call.1} parent=51 // pred_region
          %s544 = sand.u32 %s141, 1
          %s545 = scalar_lea.sflag [#allocation4], %s544
          %s546 = sand.u32 %s141, 1
          %s547 = smul.addr %s546, 128
          %s548 = scalar_lea.vmem [#allocation5], %s547
          %549 = dma.done %s545, 2048
        $region56: #{tpu_custom_call.1} parent=51 // pred_fallthru
          _
      $region52: #{tpu_custom_call.1} parent=5 // pred_fallthru
        _
    $region6: #{tpu_custom_call.1} parent=1 // loop_footer
      %s21 = sadd.s32 1, %s17
    $region7: #{tpu_custom_call.1} parent=1 // loop_footer_branch
      %16 = sbr.rel target = $region3
    $region8: #{tpu_custom_call.1} parent=1 // loop_exit
      _
    %550 = vsyncpa [#allocation3], 1
    %s551 = scalar_lea.sflag [#allocation3], 1
    %552 = vsyncpa %s551, 1
    %553 = vsyncpa [#allocation4], 1
    %s554 = scalar_lea.sflag [#allocation4], 1
    %555 = vsyncpa %s554, 1

</llo_original>
